<compile_context>
chip_gen: v5e
topology: v5e:2x2
jax: 0.10.0
libtpu: 0.0.40
codegen_flags: <defaults>
</compile_context>

<pallas_src>
import math
from functools import partial

import jax
import jax.numpy as jnp
from jax.experimental import pallas as pl
from jax.experimental.pallas import tpu as pltpu

_LANES = 128
_DEFAULT_TILE_ROWS = 2048                 # rows of 128 lanes per grid step
_VMEM_BLOCK_BUDGET = 20 * 1024 * 1024     # cap on double-buffered block bytes
_VMEM_LIMIT_BYTES = 32 * 1024 * 1024      # <= scoped default on v6e/v7x, raises v5e (16 MiB default)
# Crossover vs. plain fused XLA. While natural-layout y_pred still has to be
# transposed to quantile-major in the wrapper, XLA wins for small/medium inputs.
# TODO(synk): benchmark the real per-generation crossover (review estimates 1e5-1e6).
_MIN_PALLAS_ELEMS = 1 << 17


def _round_up(x: int, m: int) -> int:
    return ((x + m - 1) // m) * m


def _cdiv(a: int, b: int) -> int:
    return -(-a // b)


def _sublane_multiple(dtype) -> int:
    # 8 for 4-byte, 16 for 2-byte, 32 for 1-byte dtypes.
    return max(8, 32 // jnp.dtype(dtype).itemsize)


def _quantile_loss_kernel(y_true_ref, y_pred_ref, out_ref, *, pos, neg):
    """Pinball-loss hot path on one lane-dense tile.

    y_true_ref: (tile_r, 128)   y_pred_ref: (nq, tile_r, 128)   out_ref: (tile_r, 128)
    pos_i = 2*w_i*q_i/nq, neg_i = 2*w_i*(1-q_i)/nq are compile-time constants, so the
    2*, the quantile weight and the final 1/nq mean are all folded. The op is
    HBM-bandwidth-bound on v5e/v6e/v7x, so the plain unrolled VPU loop is enough.
    """
    yt = y_true_ref[...].astype(jnp.float32)
    acc = jnp.zeros_like(yt)
    for i in range(len(pos)):
        diff = yt - y_pred_ref[i].astype(jnp.float32)
        acc = acc + pos[i] * jnp.maximum(diff, 0.0) + neg[i] * jnp.maximum(-diff, 0.0)
    out_ref[...] = acc.astype(out_ref.dtype)


def quantile_loss(
    y_true,
    y_pred,
    quantiles,
    quantile_weights=None,
    sample_weight=None,
    *,
    y_pred_is_quantile_major: bool = False,
    tile_rows: int = _DEFAULT_TILE_ROWS,
    min_pallas_elems: int = _MIN_PALLAS_ELEMS,
):
    """Pallas-backed equivalent of QuantileLoss.forward.

    y_pred is either natural layout (..., nq) or, if y_pred_is_quantile_major=True,
    quantile-major (nq, ...) — the latter skips the wrapper transpose entirely.
    """
    nq = len(quantiles)
    if quantile_weights is None:
        quantile_weights = [1.0 / nq] * nq          # torch.ones(nq) / nq

    if y_pred_is_quantile_major:
        assert y_pred.shape[0] == nq, "leading dim of quantile-major y_pred must be num_quantiles"
        base_shape = y_pred.shape[1:]
    else:
        assert y_pred.shape[-1] == nq, "last dim of y_pred must be num_quantiles"
        base_shape = y_pred.shape[:-1]

    # Accept the "time-series dimension (normally 1)" trailing axis on y_true.
    if y_true.shape == base_shape + (1,):
        y_true = y_true.reshape(base_shape)
    assert y_true.shape == base_shape, "y_true must match y_pred element shape"

    # Fold 2*, per-quantile weight and the 1/nq mean into two constants per quantile.
    # relu form is exact for arbitrary weights / quantiles (incl. negative weights).
    pos = tuple(2.0 * float(w) * float(q) / nq for q, w in zip(quantiles, quantile_weights))
    neg = tuple(2.0 * float(w) * (1.0 - float(q)) / nq for q, w in zip(quantiles, quantile_weights))

    n = int(math.prod(base_shape)) if base_shape else 1
    out_dtype = jnp.promote_types(y_true.dtype, y_pred.dtype)

    def _yp_q(i):
        return y_pred[i] if y_pred_is_quantile_major else y_pred[..., i]

    # ---- small/medium inputs: plain XLA fuses this with ideal traffic, no transpose.
    if n < min_pallas_elems:
        yt = y_true.astype(jnp.float32)
        acc = jnp.zeros(base_shape, jnp.float32)
        for i in range(nq):
            diff = yt - _yp_q(i).astype(jnp.float32)
            acc = acc + pos[i] * jnp.maximum(diff, 0.0) + neg[i] * jnp.maximum(-diff, 0.0)
        out = acc.astype(out_dtype)
        return sample_weight * out if sample_weight is not None else out

    # ---- lane-dense (rows, 128) layout, quantile axis leading.
    C = _LANES
    rows = _cdiv(n, C)
    n_pad = rows * C

    yt_flat = y_true.reshape(-1)                    # free (row-major flatten)
    if y_pred_is_quantile_major:
        yp_flat = y_pred.reshape(nq, -1)            # free
    else:
        # TODO(synk): this transpose is one extra HBM read+write of the largest
        # array (~2x total traffic vs. the (nq+2)*itemsize/elem ideal); produce
        # quantile-major y_pred upstream (y_pred_is_quantile_major=True) to avoid it.
        yp_flat = jnp.moveaxis(y_pred, -1, 0).reshape(nq, -1)
    if n_pad != n:                                  # only pad when numel % 128 != 0
        yt_flat = jnp.pad(yt_flat, (0, n_pad - n))
        yp_flat = jnp.pad(yp_flat, ((0, 0), (0, n_pad - n)))

    yt2 = yt_flat.reshape(rows, C)                  # (R, 128)
    yp3 = yp_flat.reshape(nq, rows, C)              # (nq, R, 128)

    yt_item = jnp.dtype(y_true.dtype).itemsize
    yp_item = jnp.dtype(y_pred.dtype).itemsize
    out_item = jnp.dtype(out_dtype).itemsize
    sub = max(_sublane_multiple(y_true.dtype),
              _sublane_multiple(y_pred.dtype),
              _sublane_multiple(out_dtype))

    # Tile sizing: big tiles to amortize ~0.35us/step overhead, capped so the
    # double-buffered block footprint stays under _VMEM_BLOCK_BUDGET, and capped
    # to leave >= 2 grid steps so both v7x TensorCores get work.
    bytes_per_row = C * (nq * yp_item + yt_item + out_item)
    budget_rows = max(sub, _VMEM_BLOCK_BUDGET // (2 * bytes_per_row))
    tile_r = min(int(tile_rows), budget_rows)
    tile_r = min(tile_r, _round_up(_cdiv(rows, 2), sub))
    tile_r = max(sub, (tile_r // sub) * sub)        # dtype-correct sublane multiple

    grid = (_cdiv(rows, tile_r),)                   # ragged edge handled by block masking

    kernel = partial(_quantile_loss_kernel, pos=pos, neg=neg)
    out2 = pl.pallas_call(
        kernel,
        out_shape=jax.ShapeDtypeStruct((rows, C), out_dtype),
        grid=grid,
        in_specs=[
            pl.BlockSpec((tile_r, C), lambda i: (i, 0)),
            pl.BlockSpec((nq, tile_r, C), lambda i: (0, i, 0)),
        ],
        out_specs=pl.BlockSpec((tile_r, C), lambda i: (i, 0)),
        compiler_params=pltpu.CompilerParams(
            dimension_semantics=("parallel",),
            vmem_limit_bytes=_VMEM_LIMIT_BYTES,
        ),
        cost_estimate=pl.CostEstimate(
            flops=6 * nq * rows * C,
            transcendentals=0,
            bytes_accessed=rows * C * (nq * yp_item + yt_item + out_item),
        ),
    )(yt2, yp3)

    if n_pad != n:
        out = out2.reshape(-1)[:n].reshape(base_shape)
    else:
        out = out2.reshape(base_shape)              # free reshape, no extra pass
    if sample_weight is not None:
        out = sample_weight * out
    return out


def _quantile_loss_ref(y_true, y_pred, quantiles, quantile_weights=None):
    """Pure-JAX reference mirroring the PyTorch module, for verification."""
    nq = len(quantiles)
    if quantile_weights is None:
        quantile_weights = [1.0 / nq] * nq
    losses = []
    for i, q in enumerate(quantiles):
        yq = y_pred[..., i]
        diff = y_true - yq
        l = 2.0 * (q * jnp.maximum(diff, 0.0) + (1.0 - q) * jnp.maximum(-diff, 0.0))
        losses.append(l * quantile_weights[i])
    return jnp.mean(jnp.stack(losses, axis=-1), axis=-1)


if __name__ == "__main__":
    quantiles = [0.1, 0.5, 0.9]
    nq = len(quantiles)
    key = jax.random.PRNGKey(0)
    k1, k2, k3, k4, k5, k6 = jax.random.split(key, 6)

    # --- tiled Pallas path (jitted), lane-divisible shape -> 2-step grid.
    B, T = 4, 1024                       # n = 4096 -> rows = 32, tile_r = 16, grid = 2
    y_true = jax.random.normal(k1, (B, T), dtype=jnp.float32)
    y_pred = jax.random.normal(k2, (B, T, nq), dtype=jnp.float32)

    loss_fn = jax.jit(partial(quantile_loss, quantiles=quantiles, min_pallas_elems=0))
    out = jax.block_until_ready(loss_fn(y_true, y_pred))
    ref = _quantile_loss_ref(y_true, y_pred, quantiles)
    assert out.shape == (B, T)
    assert jnp.allclose(out, ref, rtol=1e-5, atol=1e-6), "Pallas path mismatch vs reference"

    # --- quantile-major input path (no transpose inside the wrapper).
    y_pred_qm = jnp.moveaxis(y_pred, -1, 0)
    out_qm = jax.block_until_ready(
        quantile_loss(y_true, y_pred_qm, quantiles,
                      y_pred_is_quantile_major=True, min_pallas_elems=0))
    assert jnp.allclose(out_qm, ref, rtol=1e-5, atol=1e-6), "quantile-major path mismatch"

    # --- ragged shape: numel % 128 != 0 and rows % tile_r != 0 (boundary masking).
    B2, T2 = 5, 300                      # n = 1500 -> rows = 12, tile_r = 8, grid = 2
    y_true_r = jax.random.normal(k3, (B2, T2), dtype=jnp.float32)
    y_pred_r = jax.random.normal(k4, (B2, T2, nq), dtype=jnp.float32)
    out_r = jax.block_until_ready(
        quantile_loss(y_true_r, y_pred_r, quantiles, min_pallas_elems=0))
    ref_r = _quantile_loss_ref(y_true_r, y_pred_r, quantiles)
    assert out_r.shape == (B2, T2)
    assert jnp.allclose(out_r, ref_r, rtol=1e-5, atol=1e-6), "ragged path mismatch vs reference"

    # --- tiny input: pure-XLA fallback + trailing-singleton y_true + sample_weight.
    y_true_s = jax.random.normal(k5, (2, 16, 1), dtype=jnp.float32)
    y_pred_s = jax.random.normal(k6, (2, 16, nq), dtype=jnp.float32)
    sw = 0.5
    out_s = jax.block_until_ready(
        quantile_loss(y_true_s, y_pred_s, quantiles, sample_weight=sw))
    ref_s = sw * _quantile_loss_ref(y_true_s.reshape(2, 16), y_pred_s, quantiles)
    assert out_s.shape == (2, 16)
    assert jnp.allclose(out_s, ref_s, rtol=1e-5, atol=1e-6), "fallback path mismatch vs reference"

    print("KERNEL_OK")
</pallas_src>

<mosaic_0001>
module attributes {stable_mosaic.version = 11 : i64} {
  func.func @_quantile_loss_kernel(%arg0: i32, %arg1: memref<16x128xf32, #tpu.memory_space<vmem>>, %arg2: memref<3x16x128xf32, #tpu.memory_space<vmem>>, %arg3: memref<16x128xf32, #tpu.memory_space<vmem>>) attributes {dimension_semantics = [#tpu.dimension_semantics<parallel>], iteration_bounds = array<i64: 2>, scalar_prefetch = 0 : i64, scratch_operands = 0 : i64, tpu.core_type = #tpu.core_type<tc>, window_params = [{transform_indices = @transform_0, window_bounds = array<i64: 16, 128>}, {transform_indices = @transform_1, window_bounds = array<i64: 3, 16, 128>}, {transform_indices = @transform_2, window_bounds = array<i64: 16, 128>}]} {
    %c0 = arith.constant 0 : index
    %c0_0 = arith.constant 0 : index
    %0 = vector.load %arg1[%c0, %c0_0] : memref<16x128xf32, #tpu.memory_space<vmem>>, vector<16x128xf32>
    %cst = arith.constant 0.000000e+00 : f32
    %1 = vector.broadcast %cst : f32 to vector<16x128xf32>
    %c0_1 = arith.constant 0 : index
    %c0_2 = arith.constant 0 : index
    %c0_3 = arith.constant 0 : index
    %2 = vector.load %arg2[%c0_1, %c0_2, %c0_3] : memref<3x16x128xf32, #tpu.memory_space<vmem>>, vector<1x16x128xf32>
    %3 = vector.shape_cast %2 : vector<1x16x128xf32> to vector<16x128xf32>
    %4 = arith.subf %0, %3 : vector<16x128xf32>
    %cst_4 = arith.constant 0.000000e+00 : f32
    %5 = vector.broadcast %cst_4 : f32 to vector<16x128xf32>
    %6 = arith.maximumf %4, %5 : vector<16x128xf32>
    %cst_5 = arith.constant 0.0222222228 : f32
    %7 = vector.broadcast %cst_5 : f32 to vector<16x128xf32>
    %8 = arith.mulf %7, %6 : vector<16x128xf32>
    %9 = arith.addf %1, %8 : vector<16x128xf32>
    %cst_6 = arith.constant 0.000000e+00 : f32
    %10 = vector.broadcast %cst_6 : f32 to vector<16x128xf32>
    %11 = arith.subf %10, %4 : vector<16x128xf32>
    %cst_7 = arith.constant 0.000000e+00 : f32
    %12 = vector.broadcast %cst_7 : f32 to vector<16x128xf32>
    %13 = arith.maximumf %11, %12 : vector<16x128xf32>
    %cst_8 = arith.constant 2.000000e-01 : f32
    %14 = vector.broadcast %cst_8 : f32 to vector<16x128xf32>
    %15 = arith.mulf %14, %13 : vector<16x128xf32>
    %16 = arith.addf %9, %15 : vector<16x128xf32>
    %c1 = arith.constant 1 : index
    %c0_9 = arith.constant 0 : index
    %c0_10 = arith.constant 0 : index
    %17 = vector.load %arg2[%c1, %c0_9, %c0_10] : memref<3x16x128xf32, #tpu.memory_space<vmem>>, vector<1x16x128xf32>
    %18 = vector.shape_cast %17 : vector<1x16x128xf32> to vector<16x128xf32>
    %19 = arith.subf %0, %18 : vector<16x128xf32>
    %cst_11 = arith.constant 0.000000e+00 : f32
    %20 = vector.broadcast %cst_11 : f32 to vector<16x128xf32>
    %21 = arith.maximumf %19, %20 : vector<16x128xf32>
    %cst_12 = arith.constant 0.111111112 : f32
    %22 = vector.broadcast %cst_12 : f32 to vector<16x128xf32>
    %23 = arith.mulf %22, %21 : vector<16x128xf32>
    %24 = arith.addf %16, %23 : vector<16x128xf32>
    %cst_13 = arith.constant 0.000000e+00 : f32
    %25 = vector.broadcast %cst_13 : f32 to vector<16x128xf32>
    %26 = arith.subf %25, %19 : vector<16x128xf32>
    %cst_14 = arith.constant 0.000000e+00 : f32
    %27 = vector.broadcast %cst_14 : f32 to vector<16x128xf32>
    %28 = arith.maximumf %26, %27 : vector<16x128xf32>
    %cst_15 = arith.constant 0.111111112 : f32
    %29 = vector.broadcast %cst_15 : f32 to vector<16x128xf32>
    %30 = arith.mulf %29, %28 : vector<16x128xf32>
    %31 = arith.addf %24, %30 : vector<16x128xf32>
    %c2 = arith.constant 2 : index
    %c0_16 = arith.constant 0 : index
    %c0_17 = arith.constant 0 : index
    %32 = vector.load %arg2[%c2, %c0_16, %c0_17] : memref<3x16x128xf32, #tpu.memory_space<vmem>>, vector<1x16x128xf32>
    %33 = vector.shape_cast %32 : vector<1x16x128xf32> to vector<16x128xf32>
    %34 = arith.subf %0, %33 : vector<16x128xf32>
    %cst_18 = arith.constant 0.000000e+00 : f32
    %35 = vector.broadcast %cst_18 : f32 to vector<16x128xf32>
    %36 = arith.maximumf %34, %35 : vector<16x128xf32>
    %cst_19 = arith.constant 2.000000e-01 : f32
    %37 = vector.broadcast %cst_19 : f32 to vector<16x128xf32>
    %38 = arith.mulf %37, %36 : vector<16x128xf32>
    %39 = arith.addf %31, %38 : vector<16x128xf32>
    %cst_20 = arith.constant 0.000000e+00 : f32
    %40 = vector.broadcast %cst_20 : f32 to vector<16x128xf32>
    %41 = arith.subf %40, %34 : vector<16x128xf32>
    %cst_21 = arith.constant 0.000000e+00 : f32
    %42 = vector.broadcast %cst_21 : f32 to vector<16x128xf32>
    %43 = arith.maximumf %41, %42 : vector<16x128xf32>
    %cst_22 = arith.constant 0.0222222228 : f32
    %44 = vector.broadcast %cst_22 : f32 to vector<16x128xf32>
    %45 = arith.mulf %44, %43 : vector<16x128xf32>
    %46 = arith.addf %39, %45 : vector<16x128xf32>
    %c0_23 = arith.constant 0 : index
    %c0_24 = arith.constant 0 : index
    %47 = vector.load %arg3[%c0_23, %c0_24] : memref<16x128xf32, #tpu.memory_space<vmem>>, vector<16x128xf32>
    tpu.vector_store %arg3[%c0_23, %c0_24], %46 {strides = array<i32>} : memref<16x128xf32, #tpu.memory_space<vmem>>, vector<16x128xf32>,
    return
  }
  func.func @transform_0(%arg0: i32) -> (i32, i32) {
    %c0_i32 = arith.constant 0 : i32
    %c0_i32_0 = arith.constant 0 : i32
    return %arg0, %c0_i32 : i32, i32
  }
  func.func @transform_1(%arg0: i32) -> (i32, i32, i32) {
    %c0_i32 = arith.constant 0 : i32
    %c0_i32_0 = arith.constant 0 : i32
    %c0_i32_1 = arith.constant 0 : i32
    return %c0_i32, %arg0, %c0_i32_0 : i32, i32, i32
  }
  func.func @transform_2(%arg0: i32) -> (i32, i32) {
    %c0_i32 = arith.constant 0 : i32
    %c0_i32_0 = arith.constant 0 : i32
    return %arg0, %c0_i32 : i32, i32
  }
}

</mosaic_0001>

<llo_original>
// kernel: quantile_loss.1
$region0: #{quantile_loss.1}
  #allocation0 [shape = 'u32[]', space=smem, size = 0x4, offset = 0x4, fixed_abs, tag = 'smem constant byte address 0x4 - core index']
  #allocation1 [shape = 'u32[72,128]{1,0:T(1,128)}', space=vmem, size = 0x9000, scoped, tag = 'internal scratch']
  %s0 = inlined_call_operand.vmem [shape: f32[32,128], index: 0, kind: input, shape index: {}]
  %s1 = inlined_call_operand.vmem [shape: f32[3,32,128], index: 1, kind: input, shape index: {}]
  %s2 = inlined_call_operand.vmem [shape: f32[32,128], index: 2, kind: output, shape index: {}]
  %s3 = sld [smem:[#allocation0]]
  $region79: #{quantile_loss.1} parent=0
    _
  %s5 = ssub.s32 1, %s3
  %s6 = scalar_select 0, %s5, %s3
  $region1: #{quantile_loss.1} parent=0
    #allocation2 [shape = 'u8[49152]{0}', space=vmem, size = 0xc000, scoped, tag = 'input window, operand 1']
    loop: start=0, step=1, limit=4
    $region2: #{quantile_loss.1} parent=1 // loop_pre_header
      _
    $region3: #{quantile_loss.1} parent=1 // loop_header
      %s8 = sphi 0, %s12
      %p9 = scmp.ge.s32.totalorder %s8, 4
      %s18 = sphi 0, %s20
      %s21 = sphi 0, %s18
      %s22 = sphi 0, %s21
      %s38 = sphi 0, %s22
      %s44 = sphi 0, %s46
      %s47 = sphi 0, %s44
      %s48 = sphi 0, %s47
      %s64 = sphi 0, %s48
      %s70 = sphi 0, %s72
      %s73 = sphi 0, %s70
      %s74 = sphi 0, %s73
      %s90 = sphi 0, %s74
    $region4: #{quantile_loss.1} parent=1 // loop_header_branch
      %11 = sbr.rel (%p9) target = $region8
    $region5: #{quantile_loss.1} parent=1 // loop_body
      %s13 = ssub.s32 %s8, 1
      %s14 = ssub.s32 %s8, 2
      %s15 = sadd.s32 %s8, 1
      %s16 = ssub.s32 %s8, %s15
      %p17 = scmp.eq.s32.totalorder %s16, 0
      %s19 = sadd.s32 %s18, 1
      %s20 = scalar_select %p17, %s18, %s19
      %p23 = pneg %p17
      %p24 = scmp.eq.s32.totalorder %s8, 1
      %p25 = por %p23, %p24
      %p26 = scmp.ne.s32.totalorder %s18, %s21
      %p27 = scmp.eq.s32.totalorder %s8, 0
      %p28 = por %p26, %p27
      %p29 = scmp.ne.s32.totalorder %s18, %s21
      %p30 = scmp.eq.s32.totalorder %s13, 1
      %p31 = por %p29, %p30
      %p32 = scmp.ne.s32.totalorder %s21, %s22
      %p33 = scmp.eq.s32.totalorder %s13, 0
      %p34 = por %p32, %p33
      %p35 = scmp.ne.s32.totalorder %s21, %s22
      %p36 = scmp.eq.s32.totalorder %s14, 1
      %p37 = por %p35, %p36
      %p39 = scmp.ne.s32.totalorder %s22, %s38
      %p40 = scmp.eq.s32.totalorder %s14, 0
      %p41 = por %p39, %p40
      %s42 = ssub.s32 %s8, %s15
      %p43 = scmp.eq.s32.totalorder %s42, 0
      %s45 = sadd.s32 %s44, 1
      %s46 = scalar_select %p43, %s44, %s45
      %p49 = pneg %p43
      %p50 = scmp.eq.s32.totalorder %s8, 1
      %p51 = por %p49, %p50
      %p52 = scmp.ne.s32.totalorder %s44, %s47
      %p53 = scmp.eq.s32.totalorder %s8, 0
      %p54 = por %p52, %p53
      %p55 = scmp.ne.s32.totalorder %s44, %s47
      %p56 = scmp.eq.s32.totalorder %s13, 1
      %p57 = por %p55, %p56
      %p58 = scmp.ne.s32.totalorder %s47, %s48
      %p59 = scmp.eq.s32.totalorder %s13, 0
      %p60 = por %p58, %p59
      %p61 = scmp.ne.s32.totalorder %s47, %s48
      %p62 = scmp.eq.s32.totalorder %s14, 1
      %p63 = por %p61, %p62
      %p65 = scmp.ne.s32.totalorder %s48, %s64
      %p66 = scmp.eq.s32.totalorder %s14, 0
      %p67 = por %p65, %p66
      %s68 = ssub.s32 %s8, %s15
      %p69 = scmp.eq.s32.totalorder %s68, 0
      %s71 = sadd.s32 %s70, 1
      %s72 = scalar_select %p69, %s70, %s71
      %p75 = pneg %p69
      %p76 = scmp.eq.s32.totalorder %s8, 1
      %p77 = por %p75, %p76
      %p78 = scmp.ne.s32.totalorder %s70, %s73
      %p79 = scmp.eq.s32.totalorder %s8, 0
      %p80 = por %p78, %p79
      %p81 = scmp.ne.s32.totalorder %s70, %s73
      %p82 = scmp.eq.s32.totalorder %s13, 1
      %p83 = por %p81, %p82
      %p84 = scmp.ne.s32.totalorder %s73, %s74
      %p85 = scmp.eq.s32.totalorder %s13, 0
      %p86 = por %p84, %p85
      %p87 = scmp.ne.s32.totalorder %s73, %s74
      %p88 = scmp.eq.s32.totalorder %s14, 1
      %p89 = por %p87, %p88
      %p91 = scmp.ne.s32.totalorder %s74, %s90
      %p92 = scmp.eq.s32.totalorder %s14, 0
      %p93 = por %p91, %p92
      %p94 = scmp.le.s32.totalorder 1, %s8
      %p95 = scmp.lt.s32.totalorder %s8, 3
      %p96 = pnand %p94, %p95
      %p97 = pneg %p96
      // Predicated region
      $region9: #{quantile_loss.1} parent=5 // pred_check
        _
      $region10: #{quantile_loss.1} parent=5 // pred_check_branch
        %99 = sbr.rel (%p96) target = $region12
      $region11: #{quantile_loss.1} parent=5 // pred_region
        %s100 = ssub.s32 %s8, 1
      $region12: #{quantile_loss.1} parent=5 // pred_fallthru
        _
      %p101 = scmp.lt.s32.totalorder %s8, 2
      // Predicated region
      $region13: #{quantile_loss.1} parent=5 // pred_check
        %p102 = pneg %p101
      $region14: #{quantile_loss.1} parent=5 // pred_check_branch
        %104 = sbr.rel (%p102) target = $region16
      $region15: #{quantile_loss.1} parent=5 // pred_region
        // Predicated region
        $region17: #{quantile_loss.1} parent=15 // pred_check
          %p105 = pneg %p28
        $region18: #{quantile_loss.1} parent=15 // pred_check_branch
          %107 = sbr.rel (%p105) target = $region20
        $region19: #{quantile_loss.1} parent=15 // pred_region
          %s108 = smul.u32 2, %s8
          %p109 = scmp.lt.s32.totalorder %s108, 3
          %s110 = scalar_select %p109, %s108, 3
          %s111 = smul.addr %s110, 8
          %s112 = scalar_lea.vmem %s0, %s111
          %s113 = smul.u32 2, %s8
        $region20: #{quantile_loss.1} parent=15 // pred_fallthru
          _
        // Predicated region
        $region21: #{quantile_loss.1} parent=15 // pred_check
          %p114 = pneg %p54
        $region22: #{quantile_loss.1} parent=15 // pred_check_branch
          %116 = sbr.rel (%p114) target = $region24
        $region23: #{quantile_loss.1} parent=15 // pred_region
          %s117 = sand.u32 %s44, 1
          %s118 = sand.u32 %s44, 1
          %s119 = smul.addr %s118, 48
          %s120 = scalar_lea.vmem [#allocation2], %s119
          %s121 = smul.u32 2, %s8
          %s122 = smul.addr %s121, 8
          %s123 = scalar_lea.vmem %s1, %s122
          // Predicated region
          $region25: #{quantile_loss.1} parent=23 // pred_check
            _
          $region26: #{quantile_loss.1} parent=23 // pred_check_branch
            %125 = sbr.rel (0) target = $region28
          $region27: #{quantile_loss.1} parent=23 // pred_region
            // Predicated region
            $region29: #{quantile_loss.1} parent=27 // pred_check
              _
            $region30: #{quantile_loss.1} parent=27 // pred_check_branch
              %127 = sbr.rel (0) target = $region32
            $region31: #{quantile_loss.1} parent=27 // pred_region
              // Predicated region
              $region44: #{quantile_loss.1} parent=31 // pred_check
                _
              $region45: #{quantile_loss.1} parent=31 // pred_check_branch
                %153 = sbr.rel (0) target = $region47
              $region46: #{quantile_loss.1} parent=31 // pred_region
                loop: start=0, step=1, limit=1
                $region48: #{quantile_loss.1} parent=46 // loop_pre_header
                  _
                $region49: #{quantile_loss.1} parent=46 // loop_header
                  %s155 = sphi 0, %s159
                  %p156 = scmp.ge.s32.totalorder %s155, 1
                  %s160 = sphi %s123, %s123
                  %s161 = sphi %s120, %s120
                $region50: #{quantile_loss.1} parent=46 // loop_header_branch
                  %158 = sbr.rel (%p156) target = $region54
                $region51: #{quantile_loss.1} parent=46 // loop_body
                  %v162 = vld [vmem:[%s160] sm:$0xff]
                  %163 = vst [vmem:[%s161] sm:$0xff] %v162
                  %v164 = vld [vmem:[%s160 + $0x8] sm:$0xff]
                  %165 = vst [vmem:[%s161 + $0x8] sm:$0xff] %v164
                  %v166 = vld [vmem:[%s160 + $0x20] sm:$0xff]
                  %167 = vst [vmem:[%s161 + $0x10] sm:$0xff] %v166
                  %v168 = vld [vmem:[%s160 + $0x28] sm:$0xff]
                  %169 = vst [vmem:[%s161 + $0x18] sm:$0xff] %v168
                  %v170 = vld [vmem:[%s160 + $0x40] sm:$0xff]
                  %171 = vst [vmem:[%s161 + $0x20] sm:$0xff] %v170
                  %v172 = vld [vmem:[%s160 + $0x48] sm:$0xff]
                  %173 = vst [vmem:[%s161 + $0x28] sm:$0xff] %v172
                $region52: #{quantile_loss.1} parent=46 // loop_footer
                  %s159 = sadd.s32 1, %s155
                $region53: #{quantile_loss.1} parent=46 // loop_footer_branch
                  %154 = sbr.rel target = $region49
                $region54: #{quantile_loss.1} parent=46 // loop_exit
                  _
              $region47: #{quantile_loss.1} parent=31 // pred_fallthru
                _
              // Predicated region
              $region55: #{quantile_loss.1} parent=31 // pred_check
                _
              $region56: #{quantile_loss.1} parent=31 // pred_check_branch
                %175 = sbr.rel target = $region58
              $region57: #{quantile_loss.1} parent=31 // pred_region
                _
              $region58: #{quantile_loss.1} parent=31 // pred_fallthru
                _
            $region32: #{quantile_loss.1} parent=27 // pred_fallthru
              _
            // Predicated region
            $region33: #{quantile_loss.1} parent=27 // pred_check
              _
            $region34: #{quantile_loss.1} parent=27 // pred_check_branch
              %129 = sbr.rel target = $region36
            $region35: #{quantile_loss.1} parent=27 // pred_region
              %s131 = ssub.s32 256, 1
              loop: start=0, step=1, limit=1
              $region37: #{quantile_loss.1} parent=35 // loop_pre_header
                _
              $region38: #{quantile_loss.1} parent=35 // loop_header
                %s133 = sphi 0, %s137
                %p134 = scmp.ge.s32.totalorder %s133, 1
                %s138 = sphi %s123, %s123
                %s139 = sphi %s120, %s120
              $region39: #{quantile_loss.1} parent=35 // loop_header_branch
                %136 = sbr.rel (%p134) target = $region43
              $region40: #{quantile_loss.1} parent=35 // loop_body
                %v140 = vld [vmem:[%s138] sm:%s131]
                %141 = vst [vmem:[%s139] sm:%s131] %v140
                %v142 = vld [vmem:[%s138 + $0x8] sm:%s131]
                %143 = vst [vmem:[%s139 + $0x8] sm:%s131] %v142
                %v144 = vld [vmem:[%s138 + $0x20] sm:%s131]
                %145 = vst [vmem:[%s139 + $0x10] sm:%s131] %v144
                %v146 = vld [vmem:[%s138 + $0x28] sm:%s131]
                %147 = vst [vmem:[%s139 + $0x18] sm:%s131] %v146
                %v148 = vld [vmem:[%s138 + $0x40] sm:%s131]
                %149 = vst [vmem:[%s139 + $0x20] sm:%s131] %v148
                %v150 = vld [vmem:[%s138 + $0x48] sm:%s131]
                %151 = vst [vmem:[%s139 + $0x28] sm:%s131] %v150
              $region41: #{quantile_loss.1} parent=35 // loop_footer
                %s137 = sadd.s32 1, %s133
              $region42: #{quantile_loss.1} parent=35 // loop_footer_branch
                %132 = sbr.rel target = $region38
              $region43: #{quantile_loss.1} parent=35 // loop_exit
                _
            $region36: #{quantile_loss.1} parent=27 // pred_fallthru
              _
          $region28: #{quantile_loss.1} parent=23 // pred_fallthru
            _
          %176 = vnop
        $region24: #{quantile_loss.1} parent=15 // pred_fallthru
          _
      $region16: #{quantile_loss.1} parent=5 // pred_fallthru
        _
      %p177 = scmp.le.s32.totalorder 1, %s8
      %p178 = scmp.lt.s32.totalorder %s8, 3
      %p179 = pnand %p177, %p178
      %p180 = pneg %p179
      // Predicated region
      $region59: #{quantile_loss.1} parent=5 // pred_check
        _
      $region60: #{quantile_loss.1} parent=5 // pred_check_branch
        %182 = sbr.rel (%p179) target = $region62
      $region61: #{quantile_loss.1} parent=5 // pred_region
        %s183 = ssub.s32 %s8, 1
        %s184 = sand.u32 %s47, 1
        %s185 = sand.u32 %s47, 1
        %s186 = smul.addr %s185, 48
        %s187 = scalar_lea.vmem [#allocation2], %s186
        // Predicated region
        $region63: #{quantile_loss.1} parent=61 // pred_check
          %p188 = pneg %p60
        $region64: #{quantile_loss.1} parent=61 // pred_check_branch
          %190 = sbr.rel (%p188) target = $region66
        $region65: #{quantile_loss.1} parent=61 // pred_region
          _
        $region66: #{quantile_loss.1} parent=61 // pred_fallthru
          _
        %s191 = smul.u32 2, %s13
        %p192 = scmp.lt.s32.totalorder %s191, 3
        %s193 = scalar_select %p192, %s191, 3
        %s194 = smul.addr %s193, 8
        %s195 = scalar_lea.vmem %s0, %s194
        %p196 = pneg %p34
        %p197 = pneg %p31
        %s198 = sand.u32 %s47, 1
        %s199 = sand.u32 %s47, 1
        %s200 = smul.addr %s199, 48
        %s201 = scalar_lea.vmem [#allocation2], %s200
        %p202 = pneg %p60
        %p203 = pneg %p57
        %p204 = pneg %p86
        %p205 = pneg %p83
        %s206 = smul.u32 2, %s13
        %p207 = scmp.lt.s32.totalorder %s206, 3
        %s208 = scalar_select %p207, %s206, 3
        %s209 = smul.addr %s208, 8
        %s210 = scalar_lea.vmem %s2, %s209
        %s211 = smul.u32 2, %s13
        %p212 = scmp.lt.s32.totalorder %s211, 3
        %s213 = scalar_select %p212, %s211, 3
        %s214 = smul.addr %s213, 8
        %s215 = scalar_lea.vmem %s0, %s214
        %s216 = smul.u32 2, %s13
        %s217 = smul.u32 2, %s13
        %s218 = smul.u32 2, %s13
        %p219 = scmp.lt.s32.totalorder %s218, 3
        %s220 = scalar_select %p219, %s218, 3
        %s221 = smul.addr %s220, 8
        %s222 = scalar_lea.vmem %s2, %s221
        %s223 = smul.u32 2, %s13
        %v224 = vld [vmem:[%s215] sm:$0xff]
        %v225 = vld [vmem:[%s215 + $0x8] sm:$0xff]
        %v226 = vld [vmem:[%s187] sm:$0xff]
        %v227 = vld [vmem:[%s187 + $0x8] sm:$0xff]
        %v228 = vsub.f32 %v224, %v226
        %v229 = vsub.f32 %v225, %v227
        %v230 = vmax.f32 %v228, 0.0
        %v231 = vmax.f32 %v229, 0.0
        %v232 = vmul.f32 %v230, 0.022222223
        %v233 = vmul.f32 %v231, 0.022222223
        %v234 = vadd.f32 %v232, 0.0
        %v235 = vadd.f32 %v233, 0.0
        %v236 = vsub.f32 0.0, %v228
        %v237 = vsub.f32 0.0, %v229
        %v238 = vmax.f32 %v236, 0.0
        %v239 = vmax.f32 %v237, 0.0
        %v240 = vmul.f32 %v238, 0.2
        %v241 = vmul.f32 %v239, 0.2
        %v242 = vadd.f32 %v234, %v240
        %v243 = vadd.f32 %v235, %v241
        %s244 = scalar_lea.vmem %s187, 16 [#allocation2]
        %v245 = vld [vmem:[%s244] sm:$0xff]
        %v246 = vld [vmem:[%s244 + $0x8] sm:$0xff]
        %v247 = vsub.f32 %v224, %v245
        %v248 = vsub.f32 %v225, %v246
        %v249 = vmax.f32 %v247, 0.0
        %v250 = vmax.f32 %v248, 0.0
        %v251 = vmul.f32 %v249, 0.11111111
        %v252 = vmul.f32 %v250, 0.11111111
        %v253 = vadd.f32 %v242, %v251
        %v254 = vadd.f32 %v243, %v252
        %v255 = vsub.f32 0.0, %v247
        %v256 = vsub.f32 0.0, %v248
        %v257 = vmax.f32 %v255, 0.0
        %v258 = vmax.f32 %v256, 0.0
        %v259 = vmul.f32 %v257, 0.11111111
        %v260 = vmul.f32 %v258, 0.11111111
        %v261 = vadd.f32 %v253, %v259
        %v262 = vadd.f32 %v254, %v260
        %s263 = scalar_lea.vmem %s187, 32 [#allocation2]
        %v264 = vld [vmem:[%s263] sm:$0xff]
        %v265 = vld [vmem:[%s263 + $0x8] sm:$0xff]
        %v266 = vsub.f32 %v224, %v264
        %v267 = vsub.f32 %v225, %v265
        %v268 = vmax.f32 %v266, 0.0
        %v269 = vmax.f32 %v267, 0.0
        %v270 = vmul.f32 %v268, 0.2
        %v271 = vmul.f32 %v269, 0.2
        %v272 = vadd.f32 %v261, %v270
        %v273 = vadd.f32 %v262, %v271
        %v274 = vsub.f32 0.0, %v266
        %v275 = vsub.f32 0.0, %v267
        %v276 = vmax.f32 %v274, 0.0
        %v277 = vmax.f32 %v275, 0.0
        %v278 = vmul.f32 %v276, 0.022222223
        %v279 = vmul.f32 %v277, 0.022222223
        %v280 = vadd.f32 %v272, %v278
        %v281 = vadd.f32 %v273, %v279
        %282 = vst [vmem:[%s222] sm:$0xff] %v280
        %283 = vst [vmem:[%s222 + $0x8] sm:$0xff] %v281
        %s284 = smul.u32 2, %s13
        %p285 = scmp.lt.s32.totalorder %s284, 3
        %s286 = scalar_select %p285, %s284, 3
        %s287 = smul.addr %s286, 8
        %s288 = scalar_lea.vmem %s2, %s287
        // Predicated region
        $region67: #{quantile_loss.1} parent=61 // pred_check
          %p289 = pneg %p83
        $region68: #{quantile_loss.1} parent=61 // pred_check_branch
          %291 = sbr.rel (%p289) target = $region70
        $region69: #{quantile_loss.1} parent=61 // pred_region
          %s292 = smul.u32 2, %s13
        $region70: #{quantile_loss.1} parent=61 // pred_fallthru
          _
      $region62: #{quantile_loss.1} parent=5 // pred_fallthru
        _
      %p293 = scmp.le.s32.totalorder 2, %s8
      // Predicated region
      $region71: #{quantile_loss.1} parent=5 // pred_check
        %p294 = pneg %p293
      $region72: #{quantile_loss.1} parent=5 // pred_check_branch
        %296 = sbr.rel (%p294) target = $region74
      $region73: #{quantile_loss.1} parent=5 // pred_region
        %s297 = ssub.s32 %s8, 2
        // Predicated region
        $region75: #{quantile_loss.1} parent=73 // pred_check
          %p298 = pneg %p89
        $region76: #{quantile_loss.1} parent=73 // pred_check_branch
          %300 = sbr.rel (%p298) target = $region78
        $region77: #{quantile_loss.1} parent=73 // pred_region
          %s301 = smul.u32 2, %s14
          %p302 = scmp.lt.s32.totalorder %s301, 3
          %s303 = scalar_select %p302, %s301, 3
          %s304 = smul.addr %s303, 8
          %s305 = scalar_lea.vmem %s2, %s304
        $region78: #{quantile_loss.1} parent=73 // pred_fallthru
          _
      $region74: #{quantile_loss.1} parent=5 // pred_fallthru
        _
    $region6: #{quantile_loss.1} parent=1 // loop_footer
      %s12 = sadd.s32 1, %s8
    $region7: #{quantile_loss.1} parent=1 // loop_footer_branch
      %7 = sbr.rel target = $region3
    $region8: #{quantile_loss.1} parent=1 // loop_exit
      _

</llo_original>
